<compile_context>
chip_gen: v5e
topology: v5e:2x2
jax: 0.10.0
libtpu: 0.0.40
codegen_flags: <defaults>
</compile_context>

<pallas_src>
import jax
import jax.numpy as jnp
from jax.experimental import pallas as pl
from jax.experimental.pallas import tpu as pltpu

KSIZE = 3
PAD = 1
BN_EPS = 1e-5
LANE = 128
SUBLANE = 8
VMEM_LIMIT = 64 * 1024 * 1024  # <= v7x physical VMEM per TC


def _im2col(x, k=KSIZE, pad=PAD):
    """x: [N, C, H, W] -> patches [N*H*W, C*k*k] (K ordered as (cin, kh, kw))."""
    N, C, H, W = x.shape
    xp = jnp.pad(x, ((0, 0), (0, 0), (pad, pad), (pad, pad)))
    cols = []
    for kh in range(k):
        for kw in range(k):
            cols.append(xp[:, :, kh:kh + H, kw:kw + W])
    patches = jnp.stack(cols, axis=-1)            # [N, C, H, W, k*k]
    patches = patches.transpose(0, 2, 3, 1, 4)    # [N, H, W, C, k*k]
    return patches.reshape(N * H * W, C * k * k)


def _choose_tm(m, cap):
    """Largest divisor of m that is a multiple of 8 and <= cap (fallback: m)."""
    for t in range(min(cap, m), SUBLANE - 1, -1):
        if m % t == 0 and t % SUBLANE == 0:
            return t
    return m


# ---------------- pass 1: conv tile + BN stat accumulation ------------------
def _conv_stats_kernel(xp_ref, w_ref, y_ref, sum_ref, ssq_ref):
    @pl.when(pl.program_id(0) == 0)
    def _():
        sum_ref[...] = jnp.zeros_like(sum_ref)
        ssq_ref[...] = jnp.zeros_like(ssq_ref)

    # 3x3 conv as im2col matmul on the MXU (bias dropped: cancelled by BN).
    y = jnp.dot(xp_ref[...], w_ref[...], preferred_element_type=jnp.float32)
    y_ref[...] = y
    # per-channel running sum / sum-of-squares across the M grid axis
    sum_ref[...] += jnp.sum(y, axis=0, keepdims=True)
    ssq_ref[...] += jnp.sum(y * y, axis=0, keepdims=True)


# ---------------- pass 2: normalize + ReLU ----------------------------------
def _bn_relu_kernel(y_ref, mean_ref, rstd_ref, o_ref):
    o_ref[...] = jnp.maximum(
        (y_ref[...] - mean_ref[...]) * rstd_ref[...], 0.0
    ).astype(o_ref.dtype)


def pcb_activ_forward(x, mask, weight, bias=None, *, tm_cap=4096):
    """
    x, mask: [N, Cin, H, W] (NCHW). weight: [Cout, Cin, 3, 3], bias: [Cout].
    Returns (h, new_mask): h [N, Cout, H, W], new_mask [N, Cout, H, W].
    Matches PCBActiv(in_ch, out_ch, bn=True, sample='none-3', activ='relu')
    forward in training mode (default-init BN affine: gamma=1, beta=0).
    """
    del bias  # BN mean-subtraction cancels the constant conv bias exactly.
    N, Cin, H, W = x.shape
    Cout = weight.shape[0]
    M = N * H * W
    K = Cin * KSIZE * KSIZE
    Cp = ((Cout + LANE - 1) // LANE) * LANE      # lane-dense padded channels

    # Mask before im2col: one [M, K] stream instead of two.
    masked = (x * mask).astype(jnp.float32)
    xp = _im2col(masked)                                       # [M, K]

    # Weight as [K, Cp] with zero-padded columns (discarded after the kernel).
    w_mat = weight.reshape(Cout, K).T.astype(jnp.float32)
    w_mat = jnp.pad(w_mat, ((0, 0), (0, Cp - Cout)))           # [K, Cp]

    tm = _choose_tm(M, tm_cap)
    grid = (M // tm,)

    # ---- pass 1: conv + stats (reduction axis -> "arbitrary") --------------
    y, ysum, yssq = pl.pallas_call(
        _conv_stats_kernel,
        out_shape=(
            jax.ShapeDtypeStruct((M, Cp), jnp.float32),
            jax.ShapeDtypeStruct((1, Cp), jnp.float32),
            jax.ShapeDtypeStruct((1, Cp), jnp.float32),
        ),
        grid=grid,
        in_specs=[
            pl.BlockSpec((tm, K), lambda i: (i, 0)),
            pl.BlockSpec((K, Cp), lambda i: (0, 0)),   # VMEM-resident weight
        ],
        out_specs=(
            pl.BlockSpec((tm, Cp), lambda i: (i, 0)),
            pl.BlockSpec((1, Cp), lambda i: (0, 0)),   # resident accumulators
            pl.BlockSpec((1, Cp), lambda i: (0, 0)),
        ),
        compiler_params=pltpu.CompilerParams(
            dimension_semantics=("arbitrary",),
            vmem_limit_bytes=VMEM_LIMIT,
        ),
    )(xp, w_mat)

    # Tiny [1, Cp] finalize in plain JAX (one-pass variance).
    mean = ysum / M
    var = jnp.maximum(yssq / M - mean * mean, 0.0)
    rstd = jax.lax.rsqrt(var + BN_EPS)

    # ---- pass 2: normalize + ReLU (embarrassingly parallel over M) ---------
    out = pl.pallas_call(
        _bn_relu_kernel,
        out_shape=jax.ShapeDtypeStruct((M, Cp), jnp.float32),
        grid=grid,
        in_specs=[
            pl.BlockSpec((tm, Cp), lambda i: (i, 0)),
            pl.BlockSpec((1, Cp), lambda i: (0, 0)),
            pl.BlockSpec((1, Cp), lambda i: (0, 0)),
        ],
        out_specs=pl.BlockSpec((tm, Cp), lambda i: (i, 0)),
        compiler_params=pltpu.CompilerParams(
            dimension_semantics=("parallel",),
            vmem_limit_bytes=VMEM_LIMIT,
        ),
    )(y, mean, rstd)

    h = out[:, :Cout].reshape(N, H, W, Cout).transpose(0, 3, 1, 2)  # NCHW

    # stride == 1 branch: new_mask = input_mask.repeat(1, out_ch//in_ch, 1, 1)
    new_mask = jnp.tile(mask, (1, Cout // Cin, 1, 1))

    # TODO(synk): PConv2d also computes mask_sum / mask_non_zero / output_0,
    #             but they are unused in the returned values, so omitted.
    # TODO(synk): BatchNorm running-stats buffer update (training-mode side
    #             effect) is not replicated; only the forward output is.
    return h, new_mask


def _reference_forward(x, mask, weight, bias):
    """Pure-JAX reference for validation."""
    masked = x * mask
    conv = jax.lax.conv_general_dilated(
        masked, weight, window_strides=(1, 1),
        padding=((PAD, PAD), (PAD, PAD)),
        dimension_numbers=('NCHW', 'OIHW', 'NCHW'),
    ) + bias.reshape(1, -1, 1, 1)
    mean = conv.mean(axis=(0, 2, 3), keepdims=True)
    var = ((conv - mean) ** 2).mean(axis=(0, 2, 3), keepdims=True)
    h = jnp.maximum((conv - mean) * jax.lax.rsqrt(var + BN_EPS), 0.0)
    new_mask = jnp.tile(mask, (1, weight.shape[0] // x.shape[1], 1, 1))
    return h, new_mask


if __name__ == "__main__":
    # PCBActiv(in_ch=4, out_ch=8, bn=True, sample='none-3', activ='relu')
    N, Cin, H, W = 2, 4, 16, 16
    Cout = 8

    key = jax.random.PRNGKey(0)
    kx, km, kw = jax.random.split(key, 3)

    x = jax.random.normal(kx, (N, Cin, H, W), dtype=jnp.float32)
    # binary mask like in partial-conv usage
    mask = (jax.random.uniform(km, (N, Cin, H, W)) > 0.3).astype(jnp.float32)

    # deterministic "kaiming-like" conv weights, zero bias (per weights_init)
    fan_in = Cin * KSIZE * KSIZE
    weight = jax.random.normal(kw, (Cout, Cin, KSIZE, KSIZE), dtype=jnp.float32) \
        * jnp.sqrt(2.0 / fan_in)
    bias = jnp.zeros((Cout,), dtype=jnp.float32)

    # tm_cap=256 -> 2 tiles over M=512: exercises the cross-tile BN accumulator.
    h, h_mask = pcb_activ_forward(x, mask, weight, bias, tm_cap=256)
    h = jax.block_until_ready(h)
    h_mask = jax.block_until_ready(h_mask)

    h_ref, mask_ref = _reference_forward(x, mask, weight, bias)
    assert h.shape == (N, Cout, H, W)
    assert h_mask.shape == (N, Cout, H, W)
    assert jnp.allclose(h, h_ref, atol=1e-3, rtol=1e-3), "conv/bn/relu mismatch"
    assert jnp.allclose(h_mask, mask_ref), "mask mismatch"

    print("KERNEL_OK")
</pallas_src>

<mosaic_0001>
module attributes {stable_mosaic.version = 11 : i64} {
  func.func @_conv_stats_kernel(%arg0: i32, %arg1: memref<256x36xf32, #tpu.memory_space<vmem>>, %arg2: memref<36x128xf32, #tpu.memory_space<vmem>>, %arg3: memref<256x128xf32, #tpu.memory_space<vmem>>, %arg4: memref<1x128xf32, #tpu.memory_space<vmem>>, %arg5: memref<1x128xf32, #tpu.memory_space<vmem>>) attributes {dimension_semantics = [#tpu.dimension_semantics<arbitrary>], iteration_bounds = array<i64: 2>, scalar_prefetch = 0 : i64, scratch_operands = 0 : i64, tpu.core_type = #tpu.core_type<tc>, window_params = [{transform_indices = @transform_0, window_bounds = array<i64: 256, 36>}, {pipeline_mode = #tpu.pipeline_mode<synchronous>, transform_indices = @transform_1, window_bounds = array<i64: 36, 128>}, {transform_indices = @transform_2, window_bounds = array<i64: 256, 128>}, {pipeline_mode = #tpu.pipeline_mode<synchronous>, transform_indices = @transform_3, window_bounds = array<i64: 1, 128>}, {pipeline_mode = #tpu.pipeline_mode<synchronous>, transform_indices = @transform_4, window_bounds = array<i64: 1, 128>}]} {
    %c0_i32 = arith.constant 0 : i32
    %0 = arith.cmpi eq, %arg0, %c0_i32 : i32
    %1 = arith.extui %0 : i1 to i32
    %c0_i32_0 = arith.constant 0 : i32
    %2 = arith.cmpi ne, %1, %c0_i32_0 : i32
    scf.if %2 {
      %cst_16 = arith.constant 0.000000e+00 : f32
      %18 = vector.broadcast %cst_16 : f32 to vector<1x128xf32>
      %c0_17 = arith.constant 0 : index
      %c0_18 = arith.constant 0 : index
      %19 = vector.load %arg4[%c0_17, %c0_18] : memref<1x128xf32, #tpu.memory_space<vmem>>, vector<1x128xf32>
      tpu.vector_store %arg4[%c0_17, %c0_18], %18 {strides = array<i32>} : memref<1x128xf32, #tpu.memory_space<vmem>>, vector<1x128xf32>,
      %cst_19 = arith.constant 0.000000e+00 : f32
      %20 = vector.broadcast %cst_19 : f32 to vector<1x128xf32>
      %c0_20 = arith.constant 0 : index
      %c0_21 = arith.constant 0 : index
      %21 = vector.load %arg5[%c0_20, %c0_21] : memref<1x128xf32, #tpu.memory_space<vmem>>, vector<1x128xf32>
      tpu.vector_store %arg5[%c0_20, %c0_21], %20 {strides = array<i32>} : memref<1x128xf32, #tpu.memory_space<vmem>>, vector<1x128xf32>,
    } else {
    }
    %c0 = arith.constant 0 : index
    %c0_1 = arith.constant 0 : index
    %3 = vector.load %arg1[%c0, %c0_1] : memref<256x36xf32, #tpu.memory_space<vmem>>, vector<256x36xf32>
    %c0_2 = arith.constant 0 : index
    %c0_3 = arith.constant 0 : index
    %4 = vector.load %arg2[%c0_2, %c0_3] : memref<36x128xf32, #tpu.memory_space<vmem>>, vector<36x128xf32>
    %cst = arith.constant dense<0.000000e+00> : vector<256x128xf32>
    %5 = tpu.matmul %3, %4, %cst {dimension_numbers = #tpu.dot_dimension_numbers<[1], [0], [0], [1], [0, 0, 1, 1], [], []>} : vector<256x36xf32>, vector<36x128xf32>, vector<256x128xf32> -> vector<256x128xf32>
    %c0_4 = arith.constant 0 : index
    %c0_5 = arith.constant 0 : index
    %6 = vector.load %arg3[%c0_4, %c0_5] : memref<256x128xf32, #tpu.memory_space<vmem>>, vector<256x128xf32>
    tpu.vector_store %arg3[%c0_4, %c0_5], %5 {strides = array<i32>} : memref<256x128xf32, #tpu.memory_space<vmem>>, vector<256x128xf32>,
    %c0_6 = arith.constant 0 : index
    %c0_7 = arith.constant 0 : index
    %7 = vector.load %arg4[%c0_6, %c0_7] : memref<1x128xf32, #tpu.memory_space<vmem>>, vector<1x128xf32>
    %cst_8 = arith.constant dense<0.000000e+00> : vector<128xf32>
    %8 = vector.multi_reduction <add>, %5, %cst_8 [0] : vector<256x128xf32> to vector<128xf32>
    %9 = vector.shape_cast %8 : vector<128xf32> to vector<1x128xf32>
    %10 = arith.addf %7, %9 : vector<1x128xf32>
    %c0_9 = arith.constant 0 : index
    %c0_10 = arith.constant 0 : index
    %11 = vector.load %arg4[%c0_9, %c0_10] : memref<1x128xf32, #tpu.memory_space<vmem>>, vector<1x128xf32>
    tpu.vector_store %arg4[%c0_9, %c0_10], %10 {strides = array<i32>} : memref<1x128xf32, #tpu.memory_space<vmem>>, vector<1x128xf32>,
    %c0_11 = arith.constant 0 : index
    %c0_12 = arith.constant 0 : index
    %12 = vector.load %arg5[%c0_11, %c0_12] : memref<1x128xf32, #tpu.memory_space<vmem>>, vector<1x128xf32>
    %13 = arith.mulf %5, %5 : vector<256x128xf32>
    %cst_13 = arith.constant dense<0.000000e+00> : vector<128xf32>
    %14 = vector.multi_reduction <add>, %13, %cst_13 [0] : vector<256x128xf32> to vector<128xf32>
    %15 = vector.shape_cast %14 : vector<128xf32> to vector<1x128xf32>
    %16 = arith.addf %12, %15 : vector<1x128xf32>
    %c0_14 = arith.constant 0 : index
    %c0_15 = arith.constant 0 : index
    %17 = vector.load %arg5[%c0_14, %c0_15] : memref<1x128xf32, #tpu.memory_space<vmem>>, vector<1x128xf32>
    tpu.vector_store %arg5[%c0_14, %c0_15], %16 {strides = array<i32>} : memref<1x128xf32, #tpu.memory_space<vmem>>, vector<1x128xf32>,
    return
  }
  func.func @transform_0(%arg0: i32) -> (i32, i32) {
    %c0_i32 = arith.constant 0 : i32
    %c0_i32_0 = arith.constant 0 : i32
    return %arg0, %c0_i32 : i32, i32
  }
  func.func @transform_1(%arg0: i32) -> (i32, i32) {
    %c0_i32 = arith.constant 0 : i32
    %c0_i32_0 = arith.constant 0 : i32
    %c0_i32_1 = arith.constant 0 : i32
    return %c0_i32, %c0_i32_0 : i32, i32
  }
  func.func @transform_2(%arg0: i32) -> (i32, i32) {
    %c0_i32 = arith.constant 0 : i32
    %c0_i32_0 = arith.constant 0 : i32
    return %arg0, %c0_i32 : i32, i32
  }
  func.func @transform_3(%arg0: i32) -> (i32, i32) {
    %c0_i32 = arith.constant 0 : i32
    %c0_i32_0 = arith.constant 0 : i32
    %c0_i32_1 = arith.constant 0 : i32
    return %c0_i32, %c0_i32_0 : i32, i32
  }
  func.func @transform_4(%arg0: i32) -> (i32, i32) {
    %c0_i32 = arith.constant 0 : i32
    %c0_i32_0 = arith.constant 0 : i32
    %c0_i32_1 = arith.constant 0 : i32
    return %c0_i32, %c0_i32_0 : i32, i32
  }
}

</mosaic_0001>

<llo_original>
// kernel: tpu_custom_call.1
$region0: #{tpu_custom_call.1}
  #allocation0 [shape = 'u32[]', space=smem, size = 0x4, offset = 0x4, fixed_abs, tag = 'smem constant byte address 0x4 - core index']
  #allocation1 [shape = 'u32[72,128]{1,0:T(1,128)}', space=vmem, size = 0x9000, scoped, tag = 'internal scratch']
  %s0 = inlined_call_operand.vmem [shape: f32[512,36], index: 0, kind: input, shape index: {}]
  %s1 = inlined_call_operand.vmem [shape: f32[36,128], index: 1, kind: input, shape index: {}]
  %s2 = inlined_call_operand.hbm [shape: f32[512,128], index: 2, kind: output, shape index: {0}]
  %s3 = inlined_call_operand.hbm [shape: f32[1,128], index: 3, kind: output, shape index: {1}]
  %s4 = inlined_call_operand.hbm [shape: f32[1,128], index: 4, kind: output, shape index: {2}]
  %5 = xla_tuple %s2, %s3, %s4
  %s6 = sld [smem:[#allocation0]]
  $region61: #{tpu_custom_call.1} parent=0
    _
  %s8 = ssub.s32 1, %s6
  %s9 = scalar_select 0, %s8, %s6
  $region1: #{tpu_custom_call.1} parent=0
    #allocation2 [shape = 'u8[262144]{0}', space=vmem, size = 0x40000, scoped, tag = 'output window, operand 0']
    #allocation3 [shape = 's32[2]{0}', space=sflag, size = 0x8, scoped, tag = 'scoped memory for tpu_custom_call.1']
    #allocation4 [shape = 'u8[512]{0}', space=vmem, size = 0x400, scoped, tag = 'output window, operand 1, single buffered']
    #allocation5 [shape = 's32[1]{0}', space=sflag, size = 0x4, scoped, tag = 'scoped memory for tpu_custom_call.1']
    #allocation6 [shape = 'u8[512]{0}', space=vmem, size = 0x400, scoped, tag = 'output window, operand 2, single buffered']
    %10 = vsyncpa [#allocation3], 0
    %s11 = scalar_lea.sflag [#allocation3], 1
    %12 = vsyncpa %s11, 0
    %13 = vsyncpa [#allocation5], 0
    loop: start=0, step=1, limit=4
    $region2: #{tpu_custom_call.1} parent=1 // loop_pre_header
      _
    $region3: #{tpu_custom_call.1} parent=1 // loop_header
      %s15 = sphi 0, %s19
      %p16 = scmp.ge.s32.totalorder %s15, 4
      %s25 = sphi 0, %s27
      %s28 = sphi 0, %s25
      %s29 = sphi 0, %s28
      %s45 = sphi 0, %s29
      %s49 = sphi 0, %s49
      %s51 = sphi 0, %s49
      %s52 = sphi 0, %s51
      %s66 = sphi 0, %s52
      %s72 = sphi 0, %s74
      %s75 = sphi 0, %s72
      %s76 = sphi 0, %s75
      %s92 = sphi 0, %s76
      %s96 = sphi 0, %s96
      %s98 = sphi 0, %s96
      %s99 = sphi 0, %s98
      %s113 = sphi 0, %s99
      %s117 = sphi 0, %s117
      %s119 = sphi 0, %s117
      %s120 = sphi 0, %s119
      %s134 = sphi 0, %s120
    $region4: #{tpu_custom_call.1} parent=1 // loop_header_branch
      %18 = sbr.rel (%p16) target = $region8
    $region5: #{tpu_custom_call.1} parent=1 // loop_body
      %s20 = ssub.s32 %s15, 1
      %s21 = ssub.s32 %s15, 2
      %s22 = sadd.s32 %s15, 1
      %s23 = ssub.s32 %s15, %s22
      %p24 = scmp.eq.s32.totalorder %s23, 0
      %s26 = sadd.s32 %s25, 1
      %s27 = scalar_select %p24, %s25, %s26
      %p30 = pneg %p24
      %p31 = scmp.eq.s32.totalorder %s15, 1
      %p32 = por %p30, %p31
      %p33 = scmp.ne.s32.totalorder %s25, %s28
      %p34 = scmp.eq.s32.totalorder %s15, 0
      %p35 = por %p33, %p34
      %p36 = scmp.ne.s32.totalorder %s25, %s28
      %p37 = scmp.eq.s32.totalorder %s20, 1
      %p38 = por %p36, %p37
      %p39 = scmp.ne.s32.totalorder %s28, %s29
      %p40 = scmp.eq.s32.totalorder %s20, 0
      %p41 = por %p39, %p40
      %p42 = scmp.ne.s32.totalorder %s28, %s29
      %p43 = scmp.eq.s32.totalorder %s21, 1
      %p44 = por %p42, %p43
      %p46 = scmp.ne.s32.totalorder %s29, %s45
      %p47 = scmp.eq.s32.totalorder %s21, 0
      %p48 = por %p46, %p47
      %s50 = sadd.s32 %s49, 1
      %p53 = scmp.eq.s32.totalorder %s15, 1
      %p54 = scmp.ne.s32.totalorder %s49, %s51
      %p55 = scmp.eq.s32.totalorder %s15, 0
      %p56 = por %p54, %p55
      %p57 = scmp.ne.s32.totalorder %s49, %s51
      %p58 = scmp.eq.s32.totalorder %s20, 1
      %p59 = por %p57, %p58
      %p60 = scmp.ne.s32.totalorder %s51, %s52
      %p61 = scmp.eq.s32.totalorder %s20, 0
      %p62 = por %p60, %p61
      %p63 = scmp.ne.s32.totalorder %s51, %s52
      %p64 = scmp.eq.s32.totalorder %s21, 1
      %p65 = por %p63, %p64
      %p67 = scmp.ne.s32.totalorder %s52, %s66
      %p68 = scmp.eq.s32.totalorder %s21, 0
      %p69 = por %p67, %p68
      %s70 = ssub.s32 %s15, %s22
      %p71 = scmp.eq.s32.totalorder %s70, 0
      %s73 = sadd.s32 %s72, 1
      %s74 = scalar_select %p71, %s72, %s73
      %p77 = pneg %p71
      %p78 = scmp.eq.s32.totalorder %s15, 1
      %p79 = por %p77, %p78
      %p80 = scmp.ne.s32.totalorder %s72, %s75
      %p81 = scmp.eq.s32.totalorder %s15, 0
      %p82 = por %p80, %p81
      %p83 = scmp.ne.s32.totalorder %s72, %s75
      %p84 = scmp.eq.s32.totalorder %s20, 1
      %p85 = por %p83, %p84
      %p86 = scmp.ne.s32.totalorder %s75, %s76
      %p87 = scmp.eq.s32.totalorder %s20, 0
      %p88 = por %p86, %p87
      %p89 = scmp.ne.s32.totalorder %s75, %s76
      %p90 = scmp.eq.s32.totalorder %s21, 1
      %p91 = por %p89, %p90
      %p93 = scmp.ne.s32.totalorder %s76, %s92
      %p94 = scmp.eq.s32.totalorder %s21, 0
      %p95 = por %p93, %p94
      %s97 = sadd.s32 %s96, 1
      %p100 = scmp.eq.s32.totalorder %s15, 1
      %p101 = scmp.ne.s32.totalorder %s96, %s98
      %p102 = scmp.eq.s32.totalorder %s15, 0
      %p103 = por %p101, %p102
      %p104 = scmp.ne.s32.totalorder %s96, %s98
      %p105 = scmp.eq.s32.totalorder %s20, 1
      %p106 = por %p104, %p105
      %p107 = scmp.ne.s32.totalorder %s98, %s99
      %p108 = scmp.eq.s32.totalorder %s20, 0
      %p109 = por %p107, %p108
      %p110 = scmp.ne.s32.totalorder %s98, %s99
      %p111 = scmp.eq.s32.totalorder %s21, 1
      %p112 = por %p110, %p111
      %p114 = scmp.ne.s32.totalorder %s99, %s113
      %p115 = scmp.eq.s32.totalorder %s21, 0
      %p116 = por %p114, %p115
      %s118 = sadd.s32 %s117, 1
      %p121 = scmp.eq.s32.totalorder %s15, 1
      %p122 = scmp.ne.s32.totalorder %s117, %s119
      %p123 = scmp.eq.s32.totalorder %s15, 0
      %p124 = por %p122, %p123
      %p125 = scmp.ne.s32.totalorder %s117, %s119
      %p126 = scmp.eq.s32.totalorder %s20, 1
      %p127 = por %p125, %p126
      %p128 = scmp.ne.s32.totalorder %s119, %s120
      %p129 = scmp.eq.s32.totalorder %s20, 0
      %p130 = por %p128, %p129
      %p131 = scmp.ne.s32.totalorder %s119, %s120
      %p132 = scmp.eq.s32.totalorder %s21, 1
      %p133 = por %p131, %p132
      %p135 = scmp.ne.s32.totalorder %s120, %s134
      %p136 = scmp.eq.s32.totalorder %s21, 0
      %p137 = por %p135, %p136
      %p138 = scmp.le.s32.totalorder 1, %s15
      %p139 = scmp.lt.s32.totalorder %s15, 3
      %p140 = pnand %p138, %p139
      %p141 = pneg %p140
      // Predicated region
      $region9: #{tpu_custom_call.1} parent=5 // pred_check
        _
      $region10: #{tpu_custom_call.1} parent=5 // pred_check_branch
        %143 = sbr.rel (%p140) target = $region12
      $region11: #{tpu_custom_call.1} parent=5 // pred_region
        %s144 = ssub.s32 %s15, 1
        // Predicated region
        $region13: #{tpu_custom_call.1} parent=11 // pred_check
          %p145 = pneg %p62
        $region14: #{tpu_custom_call.1} parent=11 // pred_check_branch
          %147 = sbr.rel (%p145) target = $region16
        $region15: #{tpu_custom_call.1} parent=11 // pred_region
          _
        $region16: #{tpu_custom_call.1} parent=11 // pred_fallthru
          _
      $region12: #{tpu_custom_call.1} parent=5 // pred_fallthru
        _
      %p148 = scmp.lt.s32.totalorder %s15, 2
      // Predicated region
      $region17: #{tpu_custom_call.1} parent=5 // pred_check
        %p149 = pneg %p148
      $region18: #{tpu_custom_call.1} parent=5 // pred_check_branch
        %151 = sbr.rel (%p149) target = $region20
      $region19: #{tpu_custom_call.1} parent=5 // pred_region
        // Predicated region
        $region21: #{tpu_custom_call.1} parent=19 // pred_check
          %p152 = pneg %p35
        $region22: #{tpu_custom_call.1} parent=19 // pred_check_branch
          %154 = sbr.rel (%p152) target = $region24
        $region23: #{tpu_custom_call.1} parent=19 // pred_region
          %s155 = smul.u32 32, %s15
          %p156 = scmp.lt.s32.totalorder %s155, 63
          %s157 = scalar_select %p156, %s155, 63
          %s158 = smul.addr %s157, 8
          %s159 = scalar_lea.vmem %s0, %s158
          %s160 = smul.u32 32, %s15
        $region24: #{tpu_custom_call.1} parent=19 // pred_fallthru
          _
      $region20: #{tpu_custom_call.1} parent=5 // pred_fallthru
        _
      %p161 = scmp.le.s32.totalorder 1, %s15
      %p162 = scmp.lt.s32.totalorder %s15, 3
      %p163 = pnand %p161, %p162
      %p164 = pneg %p163
      // Predicated region
      $region25: #{tpu_custom_call.1} parent=5 // pred_check
        _
      $region26: #{tpu_custom_call.1} parent=5 // pred_check_branch
        %166 = sbr.rel (%p163) target = $region28
      $region27: #{tpu_custom_call.1} parent=5 // pred_region
        %s167 = ssub.s32 %s15, 1
        %s168 = smul.u32 32, %s20
        %p169 = scmp.lt.s32.totalorder %s168, 63
        %s170 = scalar_select %p169, %s168, 63
        %s171 = smul.addr %s170, 8
        %s172 = scalar_lea.vmem %s0, %s171
        %p173 = pneg %p41
        %p174 = pneg %p38
        %p175 = pneg %p62
        %p176 = pneg %p59
        %p177 = pneg %p88
        %p178 = pneg %p85
        %s179 = sand.u32 %s75, 1
        %s180 = scalar_lea.sflag [#allocation3], %s179
        %s181 = sand.u32 %s75, 1
        %s182 = smul.addr %s181, 256
        %s183 = scalar_lea.vmem [#allocation2], %s182
        %p184 = pneg %p109
        %p185 = pneg %p106
        %p186 = pneg %p130
        %p187 = pneg %p127
        %s188 = smul.u32 32, %s20
        %p189 = scmp.lt.s32.totalorder %s188, 63
        %s190 = scalar_select %p189, %s188, 63
        %s191 = smul.addr %s190, 8
        %s192 = scalar_lea.vmem %s0, %s191
        %s193 = smul.u32 32, %s20
        %s194 = smul.u32 32, %s20
        %p195 = scmp.eq.s32.totalorder %s20, 0
        // Predicated region
        $region29: #{tpu_custom_call.1} parent=27 // pred_check
          %p196 = pneg %p195
        $region30: #{tpu_custom_call.1} parent=27 // pred_check_branch
          %198 = sbr.rel (%p196) target = $region32
        $region31: #{tpu_custom_call.1} parent=27 // pred_region
          %199 = vst [vmem:[#allocation4] sm:$0x1] 0.0
          %200 = vst [vmem:[#allocation6] sm:$0x1] 0.0
        $region32: #{tpu_custom_call.1} parent=27 // pred_fallthru
          _
        %v201 = vld [vmem:[%s192] sm:$0xff]
        %v202 = vld [vmem:[%s192 + $0x8] sm:$0xff]
        %v203 = vld [vmem:[%s192 + $0x10] sm:$0xff]
        %v204 = vld [vmem:[%s192 + $0x18] sm:$0xff]
        %v205 = vld [vmem:[%s192 + $0x20] sm:$0xff]
        %v206 = vld [vmem:[%s192 + $0x28] sm:$0xff]
        %v207 = vld [vmem:[%s192 + $0x30] sm:$0xff]
        %v208 = vld [vmem:[%s192 + $0x38] sm:$0xff]
        %v209 = vld [vmem:[%s192 + $0x40] sm:$0xff]
        %v210 = vld [vmem:[%s192 + $0x48] sm:$0xff]
        %v211 = vld [vmem:[%s192 + $0x50] sm:$0xff]
        %v212 = vld [vmem:[%s192 + $0x58] sm:$0xff]
        %v213 = vld [vmem:[%s192 + $0x60] sm:$0xff]
        %v214 = vld [vmem:[%s192 + $0x68] sm:$0xff]
        %v215 = vld [vmem:[%s192 + $0x70] sm:$0xff]
        %v216 = vld [vmem:[%s192 + $0x78] sm:$0xff]
        %v217 = vld [vmem:[%s192 + $0x80] sm:$0xff]
        %v218 = vld [vmem:[%s192 + $0x88] sm:$0xff]
        %v219 = vld [vmem:[%s192 + $0x90] sm:$0xff]
        %v220 = vld [vmem:[%s192 + $0x98] sm:$0xff]
        %v221 = vld [vmem:[%s192 + $0xa0] sm:$0xff]
        %v222 = vld [vmem:[%s192 + $0xa8] sm:$0xff]
        %v223 = vld [vmem:[%s192 + $0xb0] sm:$0xff]
        %v224 = vld [vmem:[%s192 + $0xb8] sm:$0xff]
        %v225 = vld [vmem:[%s192 + $0xc0] sm:$0xff]
        %v226 = vld [vmem:[%s192 + $0xc8] sm:$0xff]
        %v227 = vld [vmem:[%s192 + $0xd0] sm:$0xff]
        %v228 = vld [vmem:[%s192 + $0xd8] sm:$0xff]
        %v229 = vld [vmem:[%s192 + $0xe0] sm:$0xff]
        %v230 = vld [vmem:[%s192 + $0xe8] sm:$0xff]
        %v231 = vld [vmem:[%s192 + $0xf0] sm:$0xff]
        %v232 = vld [vmem:[%s192 + $0xf8] sm:$0xff]
        %v233 = vld [vmem:[%s1] sm:$0xff]
        %v234 = vld [vmem:[%s1 + $0x8] sm:$0xff]
        %v235 = vld [vmem:[%s1 + $0x10] sm:$0xff]
        %v236 = vld [vmem:[%s1 + $0x18] sm:$0xff]
        %v237 = vld [vmem:[%s1 + $0x20] sm:$0xf]
        %vm238 = vcmask 293888
        %v240 = vsel %vm238, %v201, 0
        %v243 = vsel %vm238, %v202, 0
        %v246 = vsel %vm238, %v203, 0
        %v249 = vsel %vm238, %v204, 0
        %v252 = vsel %vm238, %v205, 0
        %v255 = vsel %vm238, %v206, 0
        %v258 = vsel %vm238, %v207, 0
        %v261 = vsel %vm238, %v208, 0
        %v264 = vsel %vm238, %v209, 0
        %v267 = vsel %vm238, %v210, 0
        %v270 = vsel %vm238, %v211, 0
        %v273 = vsel %vm238, %v212, 0
        %v276 = vsel %vm238, %v213, 0
        %v279 = vsel %vm238, %v214, 0
        %v282 = vsel %vm238, %v215, 0
        %v285 = vsel %vm238, %v216, 0
        %v288 = vsel %vm238, %v217, 0
        %v291 = vsel %vm238, %v218, 0
        %v294 = vsel %vm238, %v219, 0
        %v297 = vsel %vm238, %v220, 0
        %v300 = vsel %vm238, %v221, 0
        %v303 = vsel %vm238, %v222, 0
        %v306 = vsel %vm238, %v223, 0
        %v309 = vsel %vm238, %v224, 0
        %v312 = vsel %vm238, %v225, 0
        %v315 = vsel %vm238, %v226, 0
        %v318 = vsel %vm238, %v227, 0
        %v321 = vsel %vm238, %v228, 0
        %v324 = vsel %vm238, %v229, 0
        %v327 = vsel %vm238, %v230, 0
        %v330 = vsel %vm238, %v231, 0
        %v333 = vsel %vm238, %v232, 0
        %vm335 = vcmask 1043456
        %v337 = vsel %vm335, %v237, 0
        %339 = vmatpush.msra.mxu0 0.0
        %340 = vmatpush.msra.mxu0 0.0
        %341 = vmatpush.msra.mxu0 0.0
        %342 = vmatpush.msra.mxu0 0.0
        %343 = vmatpush.msra.mxu0 0.0
        %344 = vmatpush.msra.mxu0 0.0
        %345 = vmatpush.msra.mxu0 0.0
        %346 = vmatpush.msra.mxu0 0.0
        %347 = vmatpush.msra.mxu0 0.0
        %348 = vmatpush.msra.mxu0 0.0
        %349 = vmatpush.msra.mxu0 0.0
        %350 = vmatpush.msra.mxu0 %v337
        %351 = vmatpush.msra.mxu0 %v236
        %352 = vmatpush.msra.mxu0 %v235
        %353 = vmatpush.msra.mxu0 %v234
        %354 = vmatpush.msra.mxu0 %v233
        %355 = vmatmul.f32.gmra.mxu0 %v240
        %v356 = vpop.f32.mrf.mxu0
        %v357 = vadd.f32 0.0, %v356
        %358 = vmatmul.f32.gmra.mxu0 %v243
        %v359 = vpop.f32.mrf.mxu0
        %v360 = vadd.f32 0.0, %v359
        %361 = vmatmul.f32.gmra.mxu0 %v246
        %v362 = vpop.f32.mrf.mxu0
        %v363 = vadd.f32 0.0, %v362
        %364 = vmatmul.f32.gmra.mxu0 %v249
        %v365 = vpop.f32.mrf.mxu0
        %v366 = vadd.f32 0.0, %v365
        %367 = vmatmul.f32.gmra.mxu0 %v252
        %v368 = vpop.f32.mrf.mxu0
        %v369 = vadd.f32 0.0, %v368
        %370 = vmatmul.f32.gmra.mxu0 %v255
        %v371 = vpop.f32.mrf.mxu0
        %v372 = vadd.f32 0.0, %v371
        %373 = vmatmul.f32.gmra.mxu0 %v258
        %v374 = vpop.f32.mrf.mxu0
        %v375 = vadd.f32 0.0, %v374
        %376 = vmatmul.f32.gmra.mxu0 %v261
        %v377 = vpop.f32.mrf.mxu0
        %v378 = vadd.f32 0.0, %v377
        %379 = vmatmul.f32.gmra.mxu0 %v264
        %v380 = vpop.f32.mrf.mxu0
        %v381 = vadd.f32 0.0, %v380
        %382 = vmatmul.f32.gmra.mxu0 %v267
        %v383 = vpop.f32.mrf.mxu0
        %v384 = vadd.f32 0.0, %v383
        %385 = vmatmul.f32.gmra.mxu0 %v270
        %v386 = vpop.f32.mrf.mxu0
        %v387 = vadd.f32 0.0, %v386
        %388 = vmatmul.f32.gmra.mxu0 %v273
        %v389 = vpop.f32.mrf.mxu0
        %v390 = vadd.f32 0.0, %v389
        %391 = vmatmul.f32.gmra.mxu0 %v276
        %v392 = vpop.f32.mrf.mxu0
        %v393 = vadd.f32 0.0, %v392
        %394 = vmatmul.f32.gmra.mxu0 %v279
        %v395 = vpop.f32.mrf.mxu0
        %v396 = vadd.f32 0.0, %v395
        %397 = vmatmul.f32.gmra.mxu0 %v282
        %v398 = vpop.f32.mrf.mxu0
        %v399 = vadd.f32 0.0, %v398
        %400 = vmatmul.f32.gmra.mxu0 %v285
        %v401 = vpop.f32.mrf.mxu0
        %v402 = vadd.f32 0.0, %v401
        %403 = vmatmul.f32.gmra.mxu0 %v288
        %v404 = vpop.f32.mrf.mxu0
        %v405 = vadd.f32 0.0, %v404
        %406 = vmatmul.f32.gmra.mxu0 %v291
        %v407 = vpop.f32.mrf.mxu0
        %v408 = vadd.f32 0.0, %v407
        %409 = vmatmul.f32.gmra.mxu0 %v294
        %v410 = vpop.f32.mrf.mxu0
        %v411 = vadd.f32 0.0, %v410
        %412 = vmatmul.f32.gmra.mxu0 %v297
        %v413 = vpop.f32.mrf.mxu0
        %v414 = vadd.f32 0.0, %v413
        %415 = vmatmul.f32.gmra.mxu0 %v300
        %v416 = vpop.f32.mrf.mxu0
        %v417 = vadd.f32 0.0, %v416
        %418 = vmatmul.f32.gmra.mxu0 %v303
        %v419 = vpop.f32.mrf.mxu0
        %v420 = vadd.f32 0.0, %v419
        %421 = vmatmul.f32.gmra.mxu0 %v306
        %v422 = vpop.f32.mrf.mxu0
        %v423 = vadd.f32 0.0, %v422
        %424 = vmatmul.f32.gmra.mxu0 %v309
        %v425 = vpop.f32.mrf.mxu0
        %v426 = vadd.f32 0.0, %v425
        %427 = vmatmul.f32.gmra.mxu0 %v312
        %v428 = vpop.f32.mrf.mxu0
        %v429 = vadd.f32 0.0, %v428
        %430 = vmatmul.f32.gmra.mxu0 %v315
        %v431 = vpop.f32.mrf.mxu0
        %v432 = vadd.f32 0.0, %v431
        %433 = vmatmul.f32.gmra.mxu0 %v318
        %v434 = vpop.f32.mrf.mxu0
        %v435 = vadd.f32 0.0, %v434
        %436 = vmatmul.f32.gmra.mxu0 %v321
        %v437 = vpop.f32.mrf.mxu0
        %v438 = vadd.f32 0.0, %v437
        %439 = vmatmul.f32.gmra.mxu0 %v324
        %v440 = vpop.f32.mrf.mxu0
        %v441 = vadd.f32 0.0, %v440
        %442 = vmatmul.f32.gmra.mxu0 %v327
        %v443 = vpop.f32.mrf.mxu0
        %v444 = vadd.f32 0.0, %v443
        %445 = vmatmul.f32.gmra.mxu0 %v330
        %v446 = vpop.f32.mrf.mxu0
        %v447 = vadd.f32 0.0, %v446
        %448 = vmatmul.f32.gmra.mxu0 %v333
        %v449 = vpop.f32.mrf.mxu0
        %v450 = vadd.f32 0.0, %v449
        %451 = vdwg.mxu0
        %452 = vst [vmem:[%s183] sm:$0xff] %v357
        %453 = vst [vmem:[%s183 + $0x8] sm:$0xff] %v360
        %454 = vst [vmem:[%s183 + $0x10] sm:$0xff] %v363
        %455 = vst [vmem:[%s183 + $0x18] sm:$0xff] %v366
        %456 = vst [vmem:[%s183 + $0x20] sm:$0xff] %v369
        %457 = vst [vmem:[%s183 + $0x28] sm:$0xff] %v372
        %458 = vst [vmem:[%s183 + $0x30] sm:$0xff] %v375
        %459 = vst [vmem:[%s183 + $0x38] sm:$0xff] %v378
        %460 = vst [vmem:[%s183 + $0x40] sm:$0xff] %v381
        %461 = vst [vmem:[%s183 + $0x48] sm:$0xff] %v384
        %462 = vst [vmem:[%s183 + $0x50] sm:$0xff] %v387
        %463 = vst [vmem:[%s183 + $0x58] sm:$0xff] %v390
        %464 = vst [vmem:[%s183 + $0x60] sm:$0xff] %v393
        %465 = vst [vmem:[%s183 + $0x68] sm:$0xff] %v396
        %466 = vst [vmem:[%s183 + $0x70] sm:$0xff] %v399
        %467 = vst [vmem:[%s183 + $0x78] sm:$0xff] %v402
        %468 = vst [vmem:[%s183 + $0x80] sm:$0xff] %v405
        %469 = vst [vmem:[%s183 + $0x88] sm:$0xff] %v408
        %470 = vst [vmem:[%s183 + $0x90] sm:$0xff] %v411
        %471 = vst [vmem:[%s183 + $0x98] sm:$0xff] %v414
        %472 = vst [vmem:[%s183 + $0xa0] sm:$0xff] %v417
        %473 = vst [vmem:[%s183 + $0xa8] sm:$0xff] %v420
        %474 = vst [vmem:[%s183 + $0xb0] sm:$0xff] %v423
        %475 = vst [vmem:[%s183 + $0xb8] sm:$0xff] %v426
        %476 = vst [vmem:[%s183 + $0xc0] sm:$0xff] %v429
        %477 = vst [vmem:[%s183 + $0xc8] sm:$0xff] %v432
        %478 = vst [vmem:[%s183 + $0xd0] sm:$0xff] %v435
        %479 = vst [vmem:[%s183 + $0xd8] sm:$0xff] %v438
        %480 = vst [vmem:[%s183 + $0xe0] sm:$0xff] %v441
        %481 = vst [vmem:[%s183 + $0xe8] sm:$0xff] %v444
        %482 = vst [vmem:[%s183 + $0xf0] sm:$0xff] %v447
        %483 = vst [vmem:[%s183 + $0xf8] sm:$0xff] %v450
        %v484 = vld [vmem:[#allocation4] sm:$0x1]
        %v485 = vadd.f32 %v357, %v360
        %v486 = vadd.f32 %v485, %v363
        %v487 = vadd.f32 %v486, %v366
        %v488 = vadd.f32 %v487, %v369
        %v489 = vadd.f32 %v488, %v372
        %v490 = vadd.f32 %v489, %v375
        %v491 = vadd.f32 %v490, %v378
        %v492 = vadd.f32 %v491, %v381
        %v493 = vadd.f32 %v492, %v384
        %v494 = vadd.f32 %v493, %v387
        %v495 = vadd.f32 %v494, %v390
        %v496 = vadd.f32 %v495, %v393
        %v497 = vadd.f32 %v496, %v396
        %v498 = vadd.f32 %v497, %v399
        %v499 = vadd.f32 %v498, %v402
        %v500 = vadd.f32 %v499, %v405
        %v501 = vadd.f32 %v500, %v408
        %v502 = vadd.f32 %v501, %v411
        %v503 = vadd.f32 %v502, %v414
        %v504 = vadd.f32 %v503, %v417
        %v505 = vadd.f32 %v504, %v420
        %v506 = vadd.f32 %v505, %v423
        %v507 = vadd.f32 %v506, %v426
        %v508 = vadd.f32 %v507, %v429
        %v509 = vadd.f32 %v508, %v432
        %v510 = vadd.f32 %v509, %v435
        %v511 = vadd.f32 %v510, %v438
        %v512 = vadd.f32 %v511, %v441
        %v513 = vadd.f32 %v512, %v444
        %v514 = vadd.f32 %v513, %v447
        %v515 = vadd.f32 %v514, %v450
        %v516 = vrot.slane %v515, 4
        %v517 = vadd.f32 %v515, %v516
        %v518 = vrot.slane %v517, 2
        %v519 = vadd.f32 %v517, %v518
        %v520 = vrot.slane %v519, 1
        %v521 = vadd.f32 %v519, %v520
        %v522 = vadd.f32 %v484, %v521
        %523 = vst [vmem:[#allocation4] sm:$0x1] %v522
        %v524 = vld [vmem:[#allocation6] sm:$0x1]
        %v525 = vmul.f32 %v357, %v357
        %v526 = vmul.f32 %v360, %v360
        %v527 = vmul.f32 %v363, %v363
        %v528 = vmul.f32 %v366, %v366
        %v529 = vmul.f32 %v369, %v369
        %v530 = vmul.f32 %v372, %v372
        %v531 = vmul.f32 %v375, %v375
        %v532 = vmul.f32 %v378, %v378
        %v533 = vmul.f32 %v381, %v381
        %v534 = vmul.f32 %v384, %v384
        %v535 = vmul.f32 %v387, %v387
        %v536 = vmul.f32 %v390, %v390
        %v537 = vmul.f32 %v393, %v393
        %v538 = vmul.f32 %v396, %v396
        %v539 = vmul.f32 %v399, %v399
        %v540 = vmul.f32 %v402, %v402
        %v541 = vmul.f32 %v405, %v405
        %v542 = vmul.f32 %v408, %v408
        %v543 = vmul.f32 %v411, %v411
        %v544 = vmul.f32 %v414, %v414
        %v545 = vmul.f32 %v417, %v417
        %v546 = vmul.f32 %v420, %v420
        %v547 = vmul.f32 %v423, %v423
        %v548 = vmul.f32 %v426, %v426
        %v549 = vmul.f32 %v429, %v429
        %v550 = vmul.f32 %v432, %v432
        %v551 = vmul.f32 %v435, %v435
        %v552 = vmul.f32 %v438, %v438
        %v553 = vmul.f32 %v441, %v441
        %v554 = vmul.f32 %v444, %v444
        %v555 = vmul.f32 %v447, %v447
        %v556 = vmul.f32 %v450, %v450
        %v557 = vadd.f32 %v525, %v526
        %v558 = vadd.f32 %v557, %v527
        %v559 = vadd.f32 %v558, %v528
        %v560 = vadd.f32 %v559, %v529
        %v561 = vadd.f32 %v560, %v530
        %v562 = vadd.f32 %v561, %v531
        %v563 = vadd.f32 %v562, %v532
        %v564 = vadd.f32 %v563, %v533
        %v565 = vadd.f32 %v564, %v534
        %v566 = vadd.f32 %v565, %v535
        %v567 = vadd.f32 %v566, %v536
        %v568 = vadd.f32 %v567, %v537
        %v569 = vadd.f32 %v568, %v538
        %v570 = vadd.f32 %v569, %v539
        %v571 = vadd.f32 %v570, %v540
        %v572 = vadd.f32 %v571, %v541
        %v573 = vadd.f32 %v572, %v542
        %v574 = vadd.f32 %v573, %v543
        %v575 = vadd.f32 %v574, %v544
        %v576 = vadd.f32 %v575, %v545
        %v577 = vadd.f32 %v576, %v546
        %v578 = vadd.f32 %v577, %v547
        %v579 = vadd.f32 %v578, %v548
        %v580 = vadd.f32 %v579, %v549
        %v581 = vadd.f32 %v580, %v550
        %v582 = vadd.f32 %v581, %v551
        %v583 = vadd.f32 %v582, %v552
        %v584 = vadd.f32 %v583, %v553
        %v585 = vadd.f32 %v584, %v554
        %v586 = vadd.f32 %v585, %v555
        %v587 = vadd.f32 %v586, %v556
        %v588 = vrot.slane %v587, 4
        %v589 = vadd.f32 %v587, %v588
        %v590 = vrot.slane %v589, 2
        %v591 = vadd.f32 %v589, %v590
        %v592 = vrot.slane %v591, 1
        %v593 = vadd.f32 %v591, %v592
        %v594 = vadd.f32 %v524, %v593
        %595 = vst [vmem:[#allocation6] sm:$0x1] %v594
        %s596 = sand.u32 %s75, 1
        %s597 = scalar_lea.sflag [#allocation3], %s596
        %s598 = sand.u32 %s75, 1
        %s599 = smul.addr %s598, 256
        %s600 = scalar_lea.vmem [#allocation2], %s599
        // Predicated region
        $region33: #{tpu_custom_call.1} parent=27 // pred_check
          %p601 = pneg %p85
        $region34: #{tpu_custom_call.1} parent=27 // pred_check_branch
          %603 = sbr.rel (%p601) target = $region36
        $region35: #{tpu_custom_call.1} parent=27 // pred_region
          %s604 = smul.u32 32, %s20
          %606 = vsyncadd %s597, 0
          %s607 = smul.addr %s604, 8
          %s608 = scalar_lea.hbm %s2, %s607
          %s609 = sshll.u32 %s600, 4
          %s610 = int_to_ptr.vmem [resolvable:$true] %s609
          %s611 = sshll.u32 %s608, 4
          %s612 = int_to_ptr.hbm [resolvable:$true] %s611
          %617 = dma.vmem_to_hbm [thread:$0]  %s610, 4096, %s612, %s597, 128, 128, 8
        $region36: #{tpu_custom_call.1} parent=27 // pred_fallthru
          _
        // Predicated region
        $region37: #{tpu_custom_call.1} parent=27 // pred_check
          %p618 = pneg %p106
        $region38: #{tpu_custom_call.1} parent=27 // pred_check_branch
          %620 = sbr.rel (%p618) target = $region40
        $region39: #{tpu_custom_call.1} parent=27 // pred_region
          %622 = vsyncadd [#allocation5], 0
          %s624 = sshll.u32 [#allocation4], 4
          %s625 = int_to_ptr.vmem [resolvable:$true] %s624
          %s626 = sshll.u32 %s3, 4
          %s627 = int_to_ptr.hbm [resolvable:$true] %s626
          %629 = dma.vmem_to_hbm [thread:$0]  %s625, 16, %s627, [#allocation5]
        $region40: #{tpu_custom_call.1} parent=27 // pred_fallthru
          _
        // Predicated region
        $region41: #{tpu_custom_call.1} parent=27 // pred_check
          %p630 = pneg %p127
        $region42: #{tpu_custom_call.1} parent=27 // pred_check_branch
          %632 = sbr.rel (%p630) target = $region44
        $region43: #{tpu_custom_call.1} parent=27 // pred_region
          %634 = vsyncadd [#allocation5], 0
          %s636 = sshll.u32 [#allocation6], 4
          %s637 = int_to_ptr.vmem [resolvable:$true] %s636
          %s638 = sshll.u32 %s4, 4
          %s639 = int_to_ptr.hbm [resolvable:$true] %s638
          %641 = dma.vmem_to_hbm [thread:$0]  %s637, 16, %s639, [#allocation5]
        $region44: #{tpu_custom_call.1} parent=27 // pred_fallthru
          _
        // Predicated region
        $region45: #{tpu_custom_call.1} parent=27 // pred_check
          %p642 = pneg %p106
        $region46: #{tpu_custom_call.1} parent=27 // pred_check_branch
          %644 = sbr.rel (%p642) target = $region48
        $region47: #{tpu_custom_call.1} parent=27 // pred_region
          %646 = dma.done [#allocation5], 16
        $region48: #{tpu_custom_call.1} parent=27 // pred_fallthru
          _
        // Predicated region
        $region49: #{tpu_custom_call.1} parent=27 // pred_check
          %p647 = pneg %p127
        $region50: #{tpu_custom_call.1} parent=27 // pred_check_branch
          %649 = sbr.rel (%p647) target = $region52
        $region51: #{tpu_custom_call.1} parent=27 // pred_region
          %651 = dma.done [#allocation5], 16
        $region52: #{tpu_custom_call.1} parent=27 // pred_fallthru
          _
      $region28: #{tpu_custom_call.1} parent=5 // pred_fallthru
        _
      %p652 = scmp.le.s32.totalorder 2, %s15
      // Predicated region
      $region53: #{tpu_custom_call.1} parent=5 // pred_check
        %p653 = pneg %p652
      $region54: #{tpu_custom_call.1} parent=5 // pred_check_branch
        %655 = sbr.rel (%p653) target = $region56
      $region55: #{tpu_custom_call.1} parent=5 // pred_region
        %s656 = ssub.s32 %s15, 2
        // Predicated region
        $region57: #{tpu_custom_call.1} parent=55 // pred_check
          %p657 = pneg %p91
        $region58: #{tpu_custom_call.1} parent=55 // pred_check_branch
          %659 = sbr.rel (%p657) target = $region60
        $region59: #{tpu_custom_call.1} parent=55 // pred_region
          %s660 = sand.u32 %s76, 1
          %s661 = scalar_lea.sflag [#allocation3], %s660
          %s662 = sand.u32 %s76, 1
          %s663 = smul.addr %s662, 256
          %s664 = scalar_lea.vmem [#allocation2], %s663
          %666 = dma.done %s661, 4096
        $region60: #{tpu_custom_call.1} parent=55 // pred_fallthru
          _
      $region56: #{tpu_custom_call.1} parent=5 // pred_fallthru
        _
    $region6: #{tpu_custom_call.1} parent=1 // loop_footer
      %s19 = sadd.s32 1, %s15
    $region7: #{tpu_custom_call.1} parent=1 // loop_footer_branch
      %14 = sbr.rel target = $region3
    $region8: #{tpu_custom_call.1} parent=1 // loop_exit
      _
    %667 = vsyncpa [#allocation3], 1
    %s668 = scalar_lea.sflag [#allocation3], 1
    %669 = vsyncpa %s668, 1
    %670 = vsyncpa [#allocation5], 1

</llo_original>
